<compile_context>
chip_gen: v7x
topology: tpu7x:2x2x1
jax: 0.10.0
libtpu: 0.0.40
codegen_flags: <defaults>
</compile_context>

<pallas_src>
import functools

import jax
import jax.numpy as jnp
from jax.experimental import pallas as pl
from jax.experimental.pallas import tpu as pltpu


def _ichimoku_kernel(h_ref, l_ref, carry_ref,
                     conv_ref, base_ref, span_a_ref, span_b_ref,
                     *, conversion_period, base_period, span_b_period):
    s = h_ref[...] + l_ref[...]                       # (TR, C) f32, shared by all periods
    tr, c = s.shape

    row = jax.lax.broadcasted_iota(jnp.int32, (tr, c), 0)
    col = jax.lax.broadcasted_iota(jnp.int32, (tr, c), 1)

    # s_prev[i] = s[i-1] in flattened (row-major) order:
    #   col > 0  -> single lane roll within the row
    #   col == 0 -> previous row's last element, supplied by the carry input
    s_prev = jnp.where(col == 0, carry_ref[...], pltpu.roll(s, shift=1, axis=1))

    # Global element 0 of the series must produce exactly 0
    # (the torch.cat([zeros(1), ...]) in the reference kernel).
    # carry[0] is already 0 for the first row, so only s needs this fix.
    is_global_first = (pl.program_id(0) == 0) & (row == 0) & (col == 0)
    s_cur = jnp.where(is_global_first, 0.0, s)

    def blend(period):
        k = (period - 1) / period
        return 0.5 * (k * s_prev + (1.0 - k) * s_cur)

    conv = blend(conversion_period)
    base = blend(base_period)
    conv_ref[...] = conv
    base_ref[...] = base
    span_a_ref[...] = 0.5 * (conv + base)
    span_b_ref[...] = blend(span_b_period)


def ichimoku_cloud(high, low, close,
                   conversion_period=9, base_period=26, span_b_period=52,
                   tile_rows=8, cols=512):
    assert high.shape == low.shape == close.shape and high.ndim == 1
    n = high.shape[0]
    high = high.astype(jnp.float32)
    low = low.astype(jnp.float32)
    close = close.astype(jnp.float32)

    # Pad to a whole number of (tile_rows x cols) tiles; padding only feeds
    # forward, so it never contaminates the valid prefix.
    tile = tile_rows * cols
    n_pad = ((n + tile - 1) // tile) * tile
    pad = n_pad - n
    hp = jnp.pad(high, (0, pad))
    lp = jnp.pad(low, (0, pad))

    r = n_pad // cols
    h2 = hp.reshape(r, cols)
    l2 = lp.reshape(r, cols)

    # Per-row carry: (high + low) at the previous row's last column
    # (0 for the very first row).  Tiny (r,) strided slice in XLA.
    s_tail = hp[cols - 1::cols] + lp[cols - 1::cols]            # (r,)
    carry = jnp.concatenate(
        [jnp.zeros((1,), jnp.float32), s_tail[:-1]]).reshape(r, 1)

    kernel = functools.partial(
        _ichimoku_kernel,
        conversion_period=conversion_period,
        base_period=base_period,
        span_b_period=span_b_period)

    tile_spec = pl.BlockSpec((tile_rows, cols), lambda i: (i, 0))
    carry_spec = pl.BlockSpec((tile_rows, 1), lambda i: (i, 0))
    out_sds = jax.ShapeDtypeStruct((r, cols), jnp.float32)

    conv, base, span_a, span_b = pl.pallas_call(
        kernel,
        grid=(r // tile_rows,),
        in_specs=[tile_spec, tile_spec, carry_spec],
        out_specs=(tile_spec,) * 4,
        out_shape=(out_sds,) * 4,
        compiler_params=pltpu.CompilerParams(
            dimension_semantics=("parallel",)),
    )(h2, l2, carry)

    unpad = lambda x: x.reshape(n_pad)[:n]
    # chikou span: pure circular shift of the original series; done at copy
    # speed in XLA rather than inside the tiled kernel (per perf review).
    chikou = jnp.roll(close, -base_period)
    return (unpad(conv), unpad(base), unpad(span_a), unpad(span_b), chikou)


def _reference(high, low, close,
               conversion_period=9, base_period=26, span_b_period=52):
    def kern(x, period):
        k = (period - 1) / period
        return jnp.concatenate(
            [jnp.zeros((1,), x.dtype), k * x[:-1] + (1 - k) * x[1:]])
    conv = (kern(high, conversion_period) + kern(low, conversion_period)) / 2
    base = (kern(high, base_period) + kern(low, base_period)) / 2
    span_a = (conv + base) / 2
    span_b = (kern(high, span_b_period) + kern(low, span_b_period)) / 2
    chikou = jnp.roll(close, -base_period)
    return conv, base, span_a, span_b, chikou


if __name__ == "__main__":
    N = 10000   # exercises multiple grid tiles (3 x 4096) and the padding path
    key = jax.random.PRNGKey(0)
    k1, k2, k3 = jax.random.split(key, 3)
    base_price = 100.0 + jax.random.normal(k1, (N,), jnp.float32).cumsum()
    spread = jnp.abs(jax.random.normal(k2, (N,), jnp.float32))
    high = base_price + spread
    low = base_price - spread
    close = base_price + 0.5 * spread * jax.random.normal(k3, (N,), jnp.float32)

    outs = jax.block_until_ready(ichimoku_cloud(high, low, close))
    refs = _reference(high, low, close)
    for o, rf in zip(outs, refs):
        assert o.shape == rf.shape and o.dtype == rf.dtype
        err = float(jnp.max(jnp.abs(o - rf)))
        tol = 1e-5 * (1.0 + float(jnp.max(jnp.abs(rf)))) + 1e-5
        assert err <= tol, (err, tol)

    print("KERNEL_OK")
</pallas_src>

<mosaic_0001>
module attributes {stable_mosaic.version = 11 : i64} {
  func.func @_ichimoku_kernel(%arg0: i32, %arg1: memref<8x512xf32, #tpu.memory_space<vmem>>, %arg2: memref<8x512xf32, #tpu.memory_space<vmem>>, %arg3: memref<8x1xf32, #tpu.memory_space<vmem>>, %arg4: memref<8x512xf32, #tpu.memory_space<vmem>>, %arg5: memref<8x512xf32, #tpu.memory_space<vmem>>, %arg6: memref<8x512xf32, #tpu.memory_space<vmem>>, %arg7: memref<8x512xf32, #tpu.memory_space<vmem>>) attributes {dimension_semantics = [#tpu.dimension_semantics<parallel>], iteration_bounds = array<i64: 3>, scalar_prefetch = 0 : i64, scratch_operands = 0 : i64, tpu.core_type = #tpu.core_type<tc>, window_params = [{transform_indices = @transform_0, window_bounds = array<i64: 8, 512>}, {transform_indices = @transform_1, window_bounds = array<i64: 8, 512>}, {transform_indices = @transform_2, window_bounds = array<i64: 8, 1>}, {transform_indices = @transform_3, window_bounds = array<i64: 8, 512>}, {transform_indices = @transform_4, window_bounds = array<i64: 8, 512>}, {transform_indices = @transform_5, window_bounds = array<i64: 8, 512>}, {transform_indices = @transform_6, window_bounds = array<i64: 8, 512>}]} {
    %c0 = arith.constant 0 : index
    %c0_0 = arith.constant 0 : index
    %0 = vector.load %arg1[%c0, %c0_0] : memref<8x512xf32, #tpu.memory_space<vmem>>, vector<8x512xf32>
    %c0_1 = arith.constant 0 : index
    %c0_2 = arith.constant 0 : index
    %1 = vector.load %arg2[%c0_1, %c0_2] : memref<8x512xf32, #tpu.memory_space<vmem>>, vector<8x512xf32>
    %2 = arith.addf %0, %1 : vector<8x512xf32>
    %3 = tpu.iota {dimensions = array<i32: 0>} : vector<8x512xi32>
    %4 = tpu.iota {dimensions = array<i32: 1>} : vector<8x512xi32>
    %c0_i32 = arith.constant 0 : i32
    %5 = vector.broadcast %c0_i32 : i32 to vector<8x512xi32>
    %6 = arith.cmpi eq, %4, %5 : vector<8x512xi32>
    %c0_3 = arith.constant 0 : index
    %c0_4 = arith.constant 0 : index
    %7 = vector.load %arg3[%c0_3, %c0_4] : memref<8x1xf32, #tpu.memory_space<vmem>>, vector<8x1xf32>
    %c1_i32 = arith.constant 1 : i32
    %8 = tpu.dynamic_rotate %2 by %c1_i32 dim 1 : vector<8x512xf32>, i32 -> vector<8x512xf32>
    %9 = vector.shape_cast %7 : vector<8x1xf32> to vector<8x1xf32>
    %10 = vector.broadcast %9 : vector<8x1xf32> to vector<8x512xf32>
    %11 = arith.select %6, %10, %8 : vector<8x512xi1>, vector<8x512xf32>
    %c0_i32_5 = arith.constant 0 : i32
    %12 = arith.cmpi eq, %arg0, %c0_i32_5 : i32
    %c0_i32_6 = arith.constant 0 : i32
    %13 = vector.broadcast %c0_i32_6 : i32 to vector<8x512xi32>
    %14 = arith.cmpi eq, %3, %13 : vector<8x512xi32>
    %15 = vector.broadcast %12 : i1 to vector<8x512xi1>
    %16 = arith.andi %15, %14 : vector<8x512xi1>
    %c0_i32_7 = arith.constant 0 : i32
    %17 = vector.broadcast %c0_i32_7 : i32 to vector<8x512xi32>
    %18 = arith.cmpi eq, %4, %17 : vector<8x512xi32>
    %19 = arith.andi %16, %18 : vector<8x512xi1>
    %cst = arith.constant 0.000000e+00 : f32
    %20 = vector.broadcast %cst : f32 to vector<8x512xf32>
    %21 = arith.select %19, %20, %2 : vector<8x512xi1>, vector<8x512xf32>
    %cst_8 = arith.constant 0.888888895 : f32
    %22 = vector.broadcast %cst_8 : f32 to vector<8x512xf32>
    %23 = arith.mulf %22, %11 : vector<8x512xf32>
    %cst_9 = arith.constant 0.111111112 : f32
    %24 = vector.broadcast %cst_9 : f32 to vector<8x512xf32>
    %25 = arith.mulf %24, %21 : vector<8x512xf32>
    %26 = arith.addf %23, %25 : vector<8x512xf32>
    %cst_10 = arith.constant 5.000000e-01 : f32
    %27 = vector.broadcast %cst_10 : f32 to vector<8x512xf32>
    %28 = arith.mulf %27, %26 : vector<8x512xf32>
    %cst_11 = arith.constant 0.961538434 : f32
    %29 = vector.broadcast %cst_11 : f32 to vector<8x512xf32>
    %30 = arith.mulf %29, %11 : vector<8x512xf32>
    %cst_12 = arith.constant 0.0384615399 : f32
    %31 = vector.broadcast %cst_12 : f32 to vector<8x512xf32>
    %32 = arith.mulf %31, %21 : vector<8x512xf32>
    %33 = arith.addf %30, %32 : vector<8x512xf32>
    %cst_13 = arith.constant 5.000000e-01 : f32
    %34 = vector.broadcast %cst_13 : f32 to vector<8x512xf32>
    %35 = arith.mulf %34, %33 : vector<8x512xf32>
    %c0_14 = arith.constant 0 : index
    %c0_15 = arith.constant 0 : index
    %36 = vector.load %arg4[%c0_14, %c0_15] : memref<8x512xf32, #tpu.memory_space<vmem>>, vector<8x512xf32>
    tpu.vector_store %arg4[%c0_14, %c0_15], %28 {strides = array<i32>} : memref<8x512xf32, #tpu.memory_space<vmem>>, vector<8x512xf32>,
    %c0_16 = arith.constant 0 : index
    %c0_17 = arith.constant 0 : index
    %37 = vector.load %arg5[%c0_16, %c0_17] : memref<8x512xf32, #tpu.memory_space<vmem>>, vector<8x512xf32>
    tpu.vector_store %arg5[%c0_16, %c0_17], %35 {strides = array<i32>} : memref<8x512xf32, #tpu.memory_space<vmem>>, vector<8x512xf32>,
    %38 = arith.addf %28, %35 : vector<8x512xf32>
    %cst_18 = arith.constant 5.000000e-01 : f32
    %39 = vector.broadcast %cst_18 : f32 to vector<8x512xf32>
    %40 = arith.mulf %39, %38 : vector<8x512xf32>
    %c0_19 = arith.constant 0 : index
    %c0_20 = arith.constant 0 : index
    %41 = vector.load %arg6[%c0_19, %c0_20] : memref<8x512xf32, #tpu.memory_space<vmem>>, vector<8x512xf32>
    tpu.vector_store %arg6[%c0_19, %c0_20], %40 {strides = array<i32>} : memref<8x512xf32, #tpu.memory_space<vmem>>, vector<8x512xf32>,
    %cst_21 = arith.constant 0.980769217 : f32
    %42 = vector.broadcast %cst_21 : f32 to vector<8x512xf32>
    %43 = arith.mulf %42, %11 : vector<8x512xf32>
    %cst_22 = arith.constant 0.0192307699 : f32
    %44 = vector.broadcast %cst_22 : f32 to vector<8x512xf32>
    %45 = arith.mulf %44, %21 : vector<8x512xf32>
    %46 = arith.addf %43, %45 : vector<8x512xf32>
    %cst_23 = arith.constant 5.000000e-01 : f32
    %47 = vector.broadcast %cst_23 : f32 to vector<8x512xf32>
    %48 = arith.mulf %47, %46 : vector<8x512xf32>
    %c0_24 = arith.constant 0 : index
    %c0_25 = arith.constant 0 : index
    %49 = vector.load %arg7[%c0_24, %c0_25] : memref<8x512xf32, #tpu.memory_space<vmem>>, vector<8x512xf32>
    tpu.vector_store %arg7[%c0_24, %c0_25], %48 {strides = array<i32>} : memref<8x512xf32, #tpu.memory_space<vmem>>, vector<8x512xf32>,
    return
  }
  func.func @transform_0(%arg0: i32) -> (i32, i32) {
    %c0_i32 = arith.constant 0 : i32
    %c0_i32_0 = arith.constant 0 : i32
    return %arg0, %c0_i32 : i32, i32
  }
  func.func @transform_1(%arg0: i32) -> (i32, i32) {
    %c0_i32 = arith.constant 0 : i32
    %c0_i32_0 = arith.constant 0 : i32
    return %arg0, %c0_i32 : i32, i32
  }
  func.func @transform_2(%arg0: i32) -> (i32, i32) {
    %c0_i32 = arith.constant 0 : i32
    %c0_i32_0 = arith.constant 0 : i32
    return %arg0, %c0_i32 : i32, i32
  }
  func.func @transform_3(%arg0: i32) -> (i32, i32) {
    %c0_i32 = arith.constant 0 : i32
    %c0_i32_0 = arith.constant 0 : i32
    return %arg0, %c0_i32 : i32, i32
  }
  func.func @transform_4(%arg0: i32) -> (i32, i32) {
    %c0_i32 = arith.constant 0 : i32
    %c0_i32_0 = arith.constant 0 : i32
    return %arg0, %c0_i32 : i32, i32
  }
  func.func @transform_5(%arg0: i32) -> (i32, i32) {
    %c0_i32 = arith.constant 0 : i32
    %c0_i32_0 = arith.constant 0 : i32
    return %arg0, %c0_i32 : i32, i32
  }
  func.func @transform_6(%arg0: i32) -> (i32, i32) {
    %c0_i32 = arith.constant 0 : i32
    %c0_i32_0 = arith.constant 0 : i32
    return %arg0, %c0_i32 : i32, i32
  }
}

</mosaic_0001>

<llo_original>
// kernel: tpu_custom_call.1
$region0: #{tpu_custom_call.1}
  #allocation0 [shape = 'u32[]', space=smem, size = 0x4, offset = 0x4, fixed_abs, tag = 'smem constant byte address 0x4 - core index']
  #allocation1 [shape = 'u32[144,128]{1,0:T(1,128)}', space=vmem, size = 0x12000, scoped, tag = 'internal scratch']
  %s0 = inlined_call_operand.hbm [shape: f32[24,512], index: 0, kind: input, shape index: {}]
  %s1 = inlined_call_operand.hbm [shape: f32[24,512], index: 1, kind: input, shape index: {}]
  %s2 = inlined_call_operand.vmem [shape: f32[24,1], index: 2, kind: input, shape index: {}]
  %s3 = inlined_call_operand.hbm [shape: f32[24,512], index: 3, kind: output, shape index: {0}]
  %s4 = inlined_call_operand.hbm [shape: f32[24,512], index: 4, kind: output, shape index: {1}]
  %s5 = inlined_call_operand.hbm [shape: f32[24,512], index: 5, kind: output, shape index: {2}]
  %s6 = inlined_call_operand.hbm [shape: f32[24,512], index: 6, kind: output, shape index: {3}]
  %7 = xla_tuple %s3, %s4, %s5, %s6
  %s8 = sld [smem:[#allocation0]]
  $region77: #{tpu_custom_call.1} parent=0
    _
  %s10 = ssub.s32 1, %s8
  %s11 = scalar_select 0, %s10, %s8
  $region1: #{tpu_custom_call.1} parent=0
    #allocation2 [shape = 'u8[32768]{0}', space=vmem, size = 0x8000, scoped, tag = 'input window, operand 0']
    #allocation3 [shape = 's32[2]{0}', space=sflag, size = 0x8, scoped, tag = 'scoped memory for tpu_custom_call.1']
    #allocation4 [shape = 's32[2]{0}', space=sflag, size = 0x8, scoped, tag = 'scoped memory for tpu_custom_call.1']
    #allocation5 [shape = 'u8[32768]{0}', space=vmem, size = 0x8000, scoped, tag = 'input window, operand 1']
    #allocation6 [shape = 's32[2]{0}', space=sflag, size = 0x8, scoped, tag = 'scoped memory for tpu_custom_call.1']
    #allocation7 [shape = 'u8[32768]{0}', space=vmem, size = 0x8000, scoped, tag = 'output window, operand 0']
    #allocation8 [shape = 'u8[32768]{0}', space=vmem, size = 0x8000, scoped, tag = 'output window, operand 1']
    #allocation9 [shape = 's32[2]{0}', space=sflag, size = 0x8, scoped, tag = 'scoped memory for tpu_custom_call.1']
    #allocation10 [shape = 'u8[32768]{0}', space=vmem, size = 0x8000, scoped, tag = 'output window, operand 2']
    #allocation11 [shape = 'u8[32768]{0}', space=vmem, size = 0x8000, scoped, tag = 'output window, operand 3']
    #allocation12 [shape = 's32[2]{0}', space=sflag, size = 0x8, scoped, tag = 'scoped memory for tpu_custom_call.1']
    %12 = vsyncpa [#allocation3], 0
    %s13 = scalar_lea.sflag [#allocation3], 1
    %14 = vsyncpa %s13, 0
    %15 = vsyncpa [#allocation6], 0
    %s16 = scalar_lea.sflag [#allocation6], 1
    %17 = vsyncpa %s16, 0
    %18 = vsyncpa [#allocation4], 0
    %s19 = scalar_lea.sflag [#allocation4], 1
    %20 = vsyncpa %s19, 0
    %21 = vsyncpa [#allocation9], 0
    %s22 = scalar_lea.sflag [#allocation9], 1
    %23 = vsyncpa %s22, 0
    %24 = vsyncpa [#allocation12], 0
    %s25 = scalar_lea.sflag [#allocation12], 1
    %26 = vsyncpa %s25, 0
    loop: start=0, step=1, limit=5
    $region2: #{tpu_custom_call.1} parent=1 // loop_pre_header
      _
    $region3: #{tpu_custom_call.1} parent=1 // loop_header
      %s28 = sphi 0, %s32
      %p29 = scmp.ge.s32.totalorder %s28, 5
      %s38 = sphi 0, %s40
      %s41 = sphi 0, %s38
      %s42 = sphi 0, %s41
      %s58 = sphi 0, %s42
      %s64 = sphi 0, %s66
      %s67 = sphi 0, %s64
      %s68 = sphi 0, %s67
      %s84 = sphi 0, %s68
      %s90 = sphi 0, %s92
      %s93 = sphi 0, %s90
      %s94 = sphi 0, %s93
      %s110 = sphi 0, %s94
      %s116 = sphi 0, %s118
      %s119 = sphi 0, %s116
      %s120 = sphi 0, %s119
      %s136 = sphi 0, %s120
      %s142 = sphi 0, %s144
      %s145 = sphi 0, %s142
      %s146 = sphi 0, %s145
      %s162 = sphi 0, %s146
      %s168 = sphi 0, %s170
      %s171 = sphi 0, %s168
      %s172 = sphi 0, %s171
      %s188 = sphi 0, %s172
      %s194 = sphi 0, %s196
      %s197 = sphi 0, %s194
      %s198 = sphi 0, %s197
      %s214 = sphi 0, %s198
    $region4: #{tpu_custom_call.1} parent=1 // loop_header_branch
      %31 = sbr.rel (%p29) target = $region8
    $region5: #{tpu_custom_call.1} parent=1 // loop_body
      %s33 = ssub.s32 %s28, 1
      %s34 = ssub.s32 %s28, 2
      %s35 = sadd.s32 %s28, 1
      %s36 = ssub.s32 %s28, %s35
      %p37 = scmp.eq.s32.totalorder %s36, 0
      %s39 = sadd.s32 %s38, 1
      %s40 = scalar_select %p37, %s38, %s39
      %p43 = pneg %p37
      %p44 = scmp.eq.s32.totalorder %s28, 2
      %p45 = por %p43, %p44
      %p46 = scmp.ne.s32.totalorder %s38, %s41
      %p47 = scmp.eq.s32.totalorder %s28, 0
      %p48 = por %p46, %p47
      %p49 = scmp.ne.s32.totalorder %s38, %s41
      %p50 = scmp.eq.s32.totalorder %s33, 2
      %p51 = por %p49, %p50
      %p52 = scmp.ne.s32.totalorder %s41, %s42
      %p53 = scmp.eq.s32.totalorder %s33, 0
      %p54 = por %p52, %p53
      %p55 = scmp.ne.s32.totalorder %s41, %s42
      %p56 = scmp.eq.s32.totalorder %s34, 2
      %p57 = por %p55, %p56
      %p59 = scmp.ne.s32.totalorder %s42, %s58
      %p60 = scmp.eq.s32.totalorder %s34, 0
      %p61 = por %p59, %p60
      %s62 = ssub.s32 %s28, %s35
      %p63 = scmp.eq.s32.totalorder %s62, 0
      %s65 = sadd.s32 %s64, 1
      %s66 = scalar_select %p63, %s64, %s65
      %p69 = pneg %p63
      %p70 = scmp.eq.s32.totalorder %s28, 2
      %p71 = por %p69, %p70
      %p72 = scmp.ne.s32.totalorder %s64, %s67
      %p73 = scmp.eq.s32.totalorder %s28, 0
      %p74 = por %p72, %p73
      %p75 = scmp.ne.s32.totalorder %s64, %s67
      %p76 = scmp.eq.s32.totalorder %s33, 2
      %p77 = por %p75, %p76
      %p78 = scmp.ne.s32.totalorder %s67, %s68
      %p79 = scmp.eq.s32.totalorder %s33, 0
      %p80 = por %p78, %p79
      %p81 = scmp.ne.s32.totalorder %s67, %s68
      %p82 = scmp.eq.s32.totalorder %s34, 2
      %p83 = por %p81, %p82
      %p85 = scmp.ne.s32.totalorder %s68, %s84
      %p86 = scmp.eq.s32.totalorder %s34, 0
      %p87 = por %p85, %p86
      %s88 = ssub.s32 %s28, %s35
      %p89 = scmp.eq.s32.totalorder %s88, 0
      %s91 = sadd.s32 %s90, 1
      %s92 = scalar_select %p89, %s90, %s91
      %p95 = pneg %p89
      %p96 = scmp.eq.s32.totalorder %s28, 2
      %p97 = por %p95, %p96
      %p98 = scmp.ne.s32.totalorder %s90, %s93
      %p99 = scmp.eq.s32.totalorder %s28, 0
      %p100 = por %p98, %p99
      %p101 = scmp.ne.s32.totalorder %s90, %s93
      %p102 = scmp.eq.s32.totalorder %s33, 2
      %p103 = por %p101, %p102
      %p104 = scmp.ne.s32.totalorder %s93, %s94
      %p105 = scmp.eq.s32.totalorder %s33, 0
      %p106 = por %p104, %p105
      %p107 = scmp.ne.s32.totalorder %s93, %s94
      %p108 = scmp.eq.s32.totalorder %s34, 2
      %p109 = por %p107, %p108
      %p111 = scmp.ne.s32.totalorder %s94, %s110
      %p112 = scmp.eq.s32.totalorder %s34, 0
      %p113 = por %p111, %p112
      %s114 = ssub.s32 %s28, %s35
      %p115 = scmp.eq.s32.totalorder %s114, 0
      %s117 = sadd.s32 %s116, 1
      %s118 = scalar_select %p115, %s116, %s117
      %p121 = pneg %p115
      %p122 = scmp.eq.s32.totalorder %s28, 2
      %p123 = por %p121, %p122
      %p124 = scmp.ne.s32.totalorder %s116, %s119
      %p125 = scmp.eq.s32.totalorder %s28, 0
      %p126 = por %p124, %p125
      %p127 = scmp.ne.s32.totalorder %s116, %s119
      %p128 = scmp.eq.s32.totalorder %s33, 2
      %p129 = por %p127, %p128
      %p130 = scmp.ne.s32.totalorder %s119, %s120
      %p131 = scmp.eq.s32.totalorder %s33, 0
      %p132 = por %p130, %p131
      %p133 = scmp.ne.s32.totalorder %s119, %s120
      %p134 = scmp.eq.s32.totalorder %s34, 2
      %p135 = por %p133, %p134
      %p137 = scmp.ne.s32.totalorder %s120, %s136
      %p138 = scmp.eq.s32.totalorder %s34, 0
      %p139 = por %p137, %p138
      %s140 = ssub.s32 %s28, %s35
      %p141 = scmp.eq.s32.totalorder %s140, 0
      %s143 = sadd.s32 %s142, 1
      %s144 = scalar_select %p141, %s142, %s143
      %p147 = pneg %p141
      %p148 = scmp.eq.s32.totalorder %s28, 2
      %p149 = por %p147, %p148
      %p150 = scmp.ne.s32.totalorder %s142, %s145
      %p151 = scmp.eq.s32.totalorder %s28, 0
      %p152 = por %p150, %p151
      %p153 = scmp.ne.s32.totalorder %s142, %s145
      %p154 = scmp.eq.s32.totalorder %s33, 2
      %p155 = por %p153, %p154
      %p156 = scmp.ne.s32.totalorder %s145, %s146
      %p157 = scmp.eq.s32.totalorder %s33, 0
      %p158 = por %p156, %p157
      %p159 = scmp.ne.s32.totalorder %s145, %s146
      %p160 = scmp.eq.s32.totalorder %s34, 2
      %p161 = por %p159, %p160
      %p163 = scmp.ne.s32.totalorder %s146, %s162
      %p164 = scmp.eq.s32.totalorder %s34, 0
      %p165 = por %p163, %p164
      %s166 = ssub.s32 %s28, %s35
      %p167 = scmp.eq.s32.totalorder %s166, 0
      %s169 = sadd.s32 %s168, 1
      %s170 = scalar_select %p167, %s168, %s169
      %p173 = pneg %p167
      %p174 = scmp.eq.s32.totalorder %s28, 2
      %p175 = por %p173, %p174
      %p176 = scmp.ne.s32.totalorder %s168, %s171
      %p177 = scmp.eq.s32.totalorder %s28, 0
      %p178 = por %p176, %p177
      %p179 = scmp.ne.s32.totalorder %s168, %s171
      %p180 = scmp.eq.s32.totalorder %s33, 2
      %p181 = por %p179, %p180
      %p182 = scmp.ne.s32.totalorder %s171, %s172
      %p183 = scmp.eq.s32.totalorder %s33, 0
      %p184 = por %p182, %p183
      %p185 = scmp.ne.s32.totalorder %s171, %s172
      %p186 = scmp.eq.s32.totalorder %s34, 2
      %p187 = por %p185, %p186
      %p189 = scmp.ne.s32.totalorder %s172, %s188
      %p190 = scmp.eq.s32.totalorder %s34, 0
      %p191 = por %p189, %p190
      %s192 = ssub.s32 %s28, %s35
      %p193 = scmp.eq.s32.totalorder %s192, 0
      %s195 = sadd.s32 %s194, 1
      %s196 = scalar_select %p193, %s194, %s195
      %p199 = pneg %p193
      %p200 = scmp.eq.s32.totalorder %s28, 2
      %p201 = por %p199, %p200
      %p202 = scmp.ne.s32.totalorder %s194, %s197
      %p203 = scmp.eq.s32.totalorder %s28, 0
      %p204 = por %p202, %p203
      %p205 = scmp.ne.s32.totalorder %s194, %s197
      %p206 = scmp.eq.s32.totalorder %s33, 2
      %p207 = por %p205, %p206
      %p208 = scmp.ne.s32.totalorder %s197, %s198
      %p209 = scmp.eq.s32.totalorder %s33, 0
      %p210 = por %p208, %p209
      %p211 = scmp.ne.s32.totalorder %s197, %s198
      %p212 = scmp.eq.s32.totalorder %s34, 2
      %p213 = por %p211, %p212
      %p215 = scmp.ne.s32.totalorder %s198, %s214
      %p216 = scmp.eq.s32.totalorder %s34, 0
      %p217 = por %p215, %p216
      %p218 = scmp.le.s32.totalorder 1, %s28
      %p219 = scmp.lt.s32.totalorder %s28, 4
      %p220 = pnand %p218, %p219
      %p221 = pneg %p220
      // Predicated region
      $region9: #{tpu_custom_call.1} parent=5 // pred_check
        _
      $region10: #{tpu_custom_call.1} parent=5 // pred_check_branch
        %223 = sbr.rel (%p220) target = $region12
      $region11: #{tpu_custom_call.1} parent=5 // pred_region
        %s224 = ssub.s32 %s28, 1
      $region12: #{tpu_custom_call.1} parent=5 // pred_fallthru
        _
      %p225 = scmp.lt.s32.totalorder %s28, 3
      // Predicated region
      $region13: #{tpu_custom_call.1} parent=5 // pred_check
        %p226 = pneg %p225
      $region14: #{tpu_custom_call.1} parent=5 // pred_check_branch
        %228 = sbr.rel (%p226) target = $region16
      $region15: #{tpu_custom_call.1} parent=5 // pred_region
        // Predicated region
        $region17: #{tpu_custom_call.1} parent=15 // pred_check
          %p229 = pneg %p48
        $region18: #{tpu_custom_call.1} parent=15 // pred_check_branch
          %231 = sbr.rel (%p229) target = $region20
        $region19: #{tpu_custom_call.1} parent=15 // pred_region
          %s232 = sand.u32 %s38, 1
          %s233 = scalar_lea.sflag [#allocation3], %s232
          %s234 = sand.u32 %s38, 1
          %s235 = smul.addr %s234, 32
          %s236 = scalar_lea.vmem [#allocation2], %s235
          %s238 = ssub.s32 512, 512
          %239 = vsyncadd %s233, %s238
          %s240 = smul.addr %s28, 4
          %s241 = smul.addr %s240, 128
          %s242 = scalar_lea.hbm %s0, %s241
          %s244 = sshll.u32 %s236, 4
          %s245 = int_to_ptr.vmem [resolvable:$true] %s244
          %247 = dma.hbm_to_vmem [thread:$0]  %s242, 512, %s245, %s233
        $region20: #{tpu_custom_call.1} parent=15 // pred_fallthru
          _
        // Predicated region
        $region21: #{tpu_custom_call.1} parent=15 // pred_check
          %p248 = pneg %p74
        $region22: #{tpu_custom_call.1} parent=15 // pred_check_branch
          %250 = sbr.rel (%p248) target = $region24
        $region23: #{tpu_custom_call.1} parent=15 // pred_region
          %s251 = sand.u32 %s64, 1
          %s252 = scalar_lea.sflag [#allocation6], %s251
          %s253 = sand.u32 %s64, 1
          %s254 = smul.addr %s253, 32
          %s255 = scalar_lea.vmem [#allocation5], %s254
          %s257 = ssub.s32 512, 512
          %258 = vsyncadd %s252, %s257
          %s259 = smul.addr %s28, 4
          %s260 = smul.addr %s259, 128
          %s261 = scalar_lea.hbm %s1, %s260
          %s263 = sshll.u32 %s255, 4
          %s264 = int_to_ptr.vmem [resolvable:$true] %s263
          %266 = dma.hbm_to_vmem [thread:$0]  %s261, 512, %s264, %s252
        $region24: #{tpu_custom_call.1} parent=15 // pred_fallthru
          _
        // Predicated region
        $region25: #{tpu_custom_call.1} parent=15 // pred_check
          %p267 = pneg %p100
        $region26: #{tpu_custom_call.1} parent=15 // pred_check_branch
          %269 = sbr.rel (%p267) target = $region28
        $region27: #{tpu_custom_call.1} parent=15 // pred_region
          %p270 = scmp.lt.s32.totalorder %s28, 2
          %s271 = scalar_select %p270, %s28, 2
          %s272 = smul.addr %s271, 8
          %s273 = scalar_lea.vmem %s2, %s272
        $region28: #{tpu_custom_call.1} parent=15 // pred_fallthru
          _
      $region16: #{tpu_custom_call.1} parent=5 // pred_fallthru
        _
      %p274 = scmp.le.s32.totalorder 1, %s28
      %p275 = scmp.lt.s32.totalorder %s28, 4
      %p276 = pnand %p274, %p275
      %p277 = pneg %p276
      // Predicated region
      $region29: #{tpu_custom_call.1} parent=5 // pred_check
        _
      $region30: #{tpu_custom_call.1} parent=5 // pred_check_branch
        %279 = sbr.rel (%p276) target = $region32
      $region31: #{tpu_custom_call.1} parent=5 // pred_region
        %s280 = ssub.s32 %s28, 1
        %s281 = sand.u32 %s41, 1
        %s282 = scalar_lea.sflag [#allocation3], %s281
        %s283 = sand.u32 %s41, 1
        %s284 = smul.addr %s283, 32
        %s285 = scalar_lea.vmem [#allocation2], %s284
        // Predicated region
        $region33: #{tpu_custom_call.1} parent=31 // pred_check
          %p286 = pneg %p54
        $region34: #{tpu_custom_call.1} parent=31 // pred_check_branch
          %288 = sbr.rel (%p286) target = $region36
        $region35: #{tpu_custom_call.1} parent=31 // pred_region
          %289 = dma.done %s282, 512
        $region36: #{tpu_custom_call.1} parent=31 // pred_fallthru
          _
        %s290 = sand.u32 %s67, 1
        %s291 = scalar_lea.sflag [#allocation6], %s290
        %s292 = sand.u32 %s67, 1
        %s293 = smul.addr %s292, 32
        %s294 = scalar_lea.vmem [#allocation5], %s293
        // Predicated region
        $region37: #{tpu_custom_call.1} parent=31 // pred_check
          %p295 = pneg %p80
        $region38: #{tpu_custom_call.1} parent=31 // pred_check_branch
          %297 = sbr.rel (%p295) target = $region40
        $region39: #{tpu_custom_call.1} parent=31 // pred_region
          %298 = dma.done %s291, 512
        $region40: #{tpu_custom_call.1} parent=31 // pred_fallthru
          _
        %s299 = sand.u32 %s41, 1
        %s300 = scalar_lea.sflag [#allocation3], %s299
        %s301 = sand.u32 %s41, 1
        %s302 = smul.addr %s301, 32
        %s303 = scalar_lea.vmem [#allocation2], %s302
        %p304 = pneg %p54
        %p305 = pneg %p51
        %s306 = sand.u32 %s67, 1
        %s307 = scalar_lea.sflag [#allocation6], %s306
        %s308 = sand.u32 %s67, 1
        %s309 = smul.addr %s308, 32
        %s310 = scalar_lea.vmem [#allocation5], %s309
        %p311 = pneg %p80
        %p312 = pneg %p77
        %p313 = scmp.lt.s32.totalorder %s33, 2
        %s314 = scalar_select %p313, %s33, 2
        %s315 = smul.addr %s314, 8
        %s316 = scalar_lea.vmem %s2, %s315
        %p317 = pneg %p106
        %p318 = pneg %p103
        %p319 = pneg %p132
        %p320 = pneg %p129
        %s321 = sand.u32 %s119, 1
        %s322 = scalar_lea.sflag [#allocation4], %s321
        %s323 = sand.u32 %s119, 1
        %s324 = smul.addr %s323, 32
        %s325 = scalar_lea.vmem [#allocation7], %s324
        %p326 = pneg %p158
        %p327 = pneg %p155
        %s328 = sand.u32 %s33, 1
        %s329 = scalar_lea.sflag [#allocation9], %s328
        %s330 = sand.u32 %s145, 1
        %s331 = smul.addr %s330, 32
        %s332 = scalar_lea.vmem [#allocation8], %s331
        %p333 = pneg %p184
        %p334 = pneg %p181
        %s335 = sand.u32 %s33, 1
        %s336 = scalar_lea.sflag [#allocation9], %s335
        %s337 = sand.u32 %s171, 1
        %s338 = smul.addr %s337, 32
        %s339 = scalar_lea.vmem [#allocation10], %s338
        %p340 = pneg %p210
        %p341 = pneg %p207
        %s342 = sand.u32 %s197, 1
        %s343 = scalar_lea.sflag [#allocation12], %s342
        %s344 = sand.u32 %s197, 1
        %s345 = smul.addr %s344, 32
        %s346 = scalar_lea.vmem [#allocation11], %s345
        %p347 = scmp.lt.s32.totalorder %s33, 2
        %s348 = scalar_select %p347, %s33, 2
        %s349 = smul.addr %s348, 8
        %s350 = scalar_lea.vmem %s2, %s349
        %v351 = vld [vmem:[%s285] sm:$0xff]
        %v352 = vld [vmem:[%s285 + $0x8] sm:$0xff]
        %v353 = vld [vmem:[%s285 + $0x10] sm:$0xff]
        %v354 = vld [vmem:[%s285 + $0x18] sm:$0xff]
        %v355 = vld [vmem:[%s294] sm:$0xff]
        %v356 = vld [vmem:[%s294 + $0x8] sm:$0xff]
        %v357 = vld [vmem:[%s294 + $0x10] sm:$0xff]
        %v358 = vld [vmem:[%s294 + $0x18] sm:$0xff]
        %v359 = vadd.f32 %v351, %v355
        %v360 = vadd.f32 %v352, %v356
        %v361 = vadd.f32 %v353, %v357
        %v362 = vadd.f32 %v354, %v358
        %v363 = vlaneseq
        %v364 = vshrl.u32 %v363, 7
        %v365 = vlaneseq
        %v366 = vand.u32 %v365, 127
        %v367 = vadd.s32 %v366, 128
        %v368 = vadd.s32 %v366, 256
        %v369 = vadd.s32 %v366, 384
        %vm370 = vcmp.eq.s32.totalorder %v366, 0
        %vm371 = vcmp.eq.s32.totalorder %v367, 0
        %vm372 = vcmp.eq.s32.totalorder %v368, 0
        %vm373 = vcmp.eq.s32.totalorder %v369, 0
        %v374 = vld [vmem:[%s350] sm:$0xff]
        %375 = vrot.lane.b32.xlu0 %v359, 1
        %v376 = vpop.permute.xlu0 %375
        %377 = vrot.lane.b32.xlu0 %v360, 1
        %v378 = vpop.permute.xlu0 %377
        %379 = vrot.lane.b32.xlu0 %v361, 1
        %v380 = vpop.permute.xlu0 %379
        %381 = vrot.lane.b32.xlu0 %v362, 1
        %v382 = vpop.permute.xlu0 %381
        %vm383 = vcmp.lt.s32.totalorder %v366, 1
        %v384 = vsel %vm383, %v380, %v382
        %v385 = vsel %vm383, %v378, %v380
        %v386 = vsel %vm383, %v376, %v378
        %v387 = vsel %vm383, %v382, %v376
        %389 = vset.pattern.permute.xlu0 0
        %390 = vperm.xlu0 %389, %v374
        %v391 = vpop.permute.xlu0 %390
        %v393 = vsel %vm370, %v391, %v387
        %v394 = vsel %vm371, %v391, %v386
        %v395 = vsel %vm372, %v391, %v385
        %v396 = vsel %vm373, %v391, %v384
        %p397 = scmp.eq.s32.totalorder %s33, 0
        %vm398 = vcmp.eq.s32.totalorder %v364, 0
        %s399 = scalar_select %p397, 1, 0
        %v400 = vstv %s399
        %vm401 = vcmp.eq.s32.totalorder %v400, 1
        %vm402 = vmand %vm401, %vm398
        %vm403 = vmand %vm402, %vm370
        %vm404 = vmand %vm402, %vm371
        %vm405 = vmand %vm402, %vm372
        %vm406 = vmand %vm402, %vm373
        %v407 = vsel %vm403, 0.0, %v359
        %v408 = vsel %vm404, 0.0, %v360
        %v409 = vsel %vm405, 0.0, %v361
        %v410 = vsel %vm406, 0.0, %v362
        %v411 = vmul.f32 %v393, 0.8888889
        %v412 = vmul.f32 %v394, 0.8888889
        %v413 = vmul.f32 %v395, 0.8888889
        %v414 = vmul.f32 %v396, 0.8888889
        %v415 = vmul.f32 %v407, 0.11111111
        %v416 = vmul.f32 %v408, 0.11111111
        %v417 = vmul.f32 %v409, 0.11111111
        %v418 = vmul.f32 %v410, 0.11111111
        %v419 = vadd.f32 %v411, %v415
        %v420 = vadd.f32 %v412, %v416
        %v421 = vadd.f32 %v413, %v417
        %v422 = vadd.f32 %v414, %v418
        %v423 = vmul.f32 %v419, 0.5
        %v424 = vmul.f32 %v420, 0.5
        %v425 = vmul.f32 %v421, 0.5
        %v426 = vmul.f32 %v422, 0.5
        %v427 = vmul.f32 %v393, 0.96153843
        %v428 = vmul.f32 %v394, 0.96153843
        %v429 = vmul.f32 %v395, 0.96153843
        %v430 = vmul.f32 %v396, 0.96153843
        %v431 = vmul.f32 %v407, 0.03846154
        %v432 = vmul.f32 %v408, 0.03846154
        %v433 = vmul.f32 %v409, 0.03846154
        %v434 = vmul.f32 %v410, 0.03846154
        %v435 = vadd.f32 %v427, %v431
        %v436 = vadd.f32 %v428, %v432
        %v437 = vadd.f32 %v429, %v433
        %v438 = vadd.f32 %v430, %v434
        %v439 = vmul.f32 %v435, 0.5
        %v440 = vmul.f32 %v436, 0.5
        %v441 = vmul.f32 %v437, 0.5
        %v442 = vmul.f32 %v438, 0.5
        %443 = vst [vmem:[%s325] sm:$0xff] %v423
        %444 = vst [vmem:[%s325 + $0x8] sm:$0xff] %v424
        %445 = vst [vmem:[%s325 + $0x10] sm:$0xff] %v425
        %446 = vst [vmem:[%s325 + $0x18] sm:$0xff] %v426
        %447 = vst [vmem:[%s332] sm:$0xff] %v439
        %448 = vst [vmem:[%s332 + $0x8] sm:$0xff] %v440
        %449 = vst [vmem:[%s332 + $0x10] sm:$0xff] %v441
        %450 = vst [vmem:[%s332 + $0x18] sm:$0xff] %v442
        %v451 = vadd.f32 %v423, %v439
        %v452 = vadd.f32 %v424, %v440
        %v453 = vadd.f32 %v425, %v441
        %v454 = vadd.f32 %v426, %v442
        %v455 = vmul.f32 %v451, 0.5
        %v456 = vmul.f32 %v452, 0.5
        %v457 = vmul.f32 %v453, 0.5
        %v458 = vmul.f32 %v454, 0.5
        %459 = vst [vmem:[%s339] sm:$0xff] %v455
        %460 = vst [vmem:[%s339 + $0x8] sm:$0xff] %v456
        %461 = vst [vmem:[%s339 + $0x10] sm:$0xff] %v457
        %462 = vst [vmem:[%s339 + $0x18] sm:$0xff] %v458
        %v463 = vmul.f32 %v393, 0.9807692
        %v464 = vmul.f32 %v394, 0.9807692
        %v465 = vmul.f32 %v395, 0.9807692
        %v466 = vmul.f32 %v396, 0.9807692
        %v467 = vmul.f32 %v407, 0.01923077
        %v468 = vmul.f32 %v408, 0.01923077
        %v469 = vmul.f32 %v409, 0.01923077
        %v470 = vmul.f32 %v410, 0.01923077
        %v471 = vadd.f32 %v463, %v467
        %v472 = vadd.f32 %v464, %v468
        %v473 = vadd.f32 %v465, %v469
        %v474 = vadd.f32 %v466, %v470
        %v475 = vmul.f32 %v471, 0.5
        %v476 = vmul.f32 %v472, 0.5
        %v477 = vmul.f32 %v473, 0.5
        %v478 = vmul.f32 %v474, 0.5
        %479 = vst [vmem:[%s346] sm:$0xff] %v475
        %480 = vst [vmem:[%s346 + $0x8] sm:$0xff] %v476
        %481 = vst [vmem:[%s346 + $0x10] sm:$0xff] %v477
        %482 = vst [vmem:[%s346 + $0x18] sm:$0xff] %v478
        %s483 = sand.u32 %s119, 1
        %s484 = scalar_lea.sflag [#allocation4], %s483
        %s485 = sand.u32 %s119, 1
        %s486 = smul.addr %s485, 32
        %s487 = scalar_lea.vmem [#allocation7], %s486
        %s488 = sand.u32 %s33, 1
        %s489 = scalar_lea.sflag [#allocation9], %s488
        %s490 = sand.u32 %s145, 1
        %s491 = smul.addr %s490, 32
        %s492 = scalar_lea.vmem [#allocation8], %s491
        %s493 = sand.u32 %s33, 1
        %s494 = scalar_lea.sflag [#allocation9], %s493
        %s495 = sand.u32 %s171, 1
        %s496 = smul.addr %s495, 32
        %s497 = scalar_lea.vmem [#allocation10], %s496
        %s498 = sand.u32 %s197, 1
        %s499 = scalar_lea.sflag [#allocation12], %s498
        %s500 = sand.u32 %s197, 1
        %s501 = smul.addr %s500, 32
        %s502 = scalar_lea.vmem [#allocation11], %s501
        // Predicated region
        $region41: #{tpu_custom_call.1} parent=31 // pred_check
          %p503 = pneg %p129
        $region42: #{tpu_custom_call.1} parent=31 // pred_check_branch
          %505 = sbr.rel (%p503) target = $region44
        $region43: #{tpu_custom_call.1} parent=31 // pred_region
          %s507 = ssub.s32 512, 512
          %508 = vsyncadd %s484, %s507
          %s509 = smul.addr %s33, 4
          %s510 = smul.addr %s509, 128
          %s511 = scalar_lea.hbm %s3, %s510
          %s513 = sshll.u32 %s487, 4
          %s514 = int_to_ptr.vmem [resolvable:$true] %s513
          %516 = dma.vmem_to_hbm [thread:$0]  %s514, 512, %s511, %s484
        $region44: #{tpu_custom_call.1} parent=31 // pred_fallthru
          _
        // Predicated region
        $region45: #{tpu_custom_call.1} parent=31 // pred_check
          %p517 = pneg %p155
        $region46: #{tpu_custom_call.1} parent=31 // pred_check_branch
          %519 = sbr.rel (%p517) target = $region48
        $region47: #{tpu_custom_call.1} parent=31 // pred_region
          %s521 = ssub.s32 512, 512
          %522 = vsyncadd %s489, %s521
          %s523 = smul.addr %s33, 4
          %s524 = smul.addr %s523, 128
          %s525 = scalar_lea.hbm %s4, %s524
          %s527 = sshll.u32 %s492, 4
          %s528 = int_to_ptr.vmem [resolvable:$true] %s527
          %530 = dma.vmem_to_hbm [thread:$0]  %s528, 512, %s525, %s489
        $region48: #{tpu_custom_call.1} parent=31 // pred_fallthru
          _
        // Predicated region
        $region49: #{tpu_custom_call.1} parent=31 // pred_check
          %p531 = pneg %p181
        $region50: #{tpu_custom_call.1} parent=31 // pred_check_branch
          %533 = sbr.rel (%p531) target = $region52
        $region51: #{tpu_custom_call.1} parent=31 // pred_region
          %s535 = ssub.s32 512, 512
          %536 = vsyncadd %s494, %s535
          %s537 = smul.addr %s33, 4
          %s538 = smul.addr %s537, 128
          %s539 = scalar_lea.hbm %s5, %s538
          %s541 = sshll.u32 %s497, 4
          %s542 = int_to_ptr.vmem [resolvable:$true] %s541
          %544 = dma.vmem_to_hbm [thread:$0]  %s542, 512, %s539, %s494
        $region52: #{tpu_custom_call.1} parent=31 // pred_fallthru
          _
        // Predicated region
        $region53: #{tpu_custom_call.1} parent=31 // pred_check
          %p545 = pneg %p207
        $region54: #{tpu_custom_call.1} parent=31 // pred_check_branch
          %547 = sbr.rel (%p545) target = $region56
        $region55: #{tpu_custom_call.1} parent=31 // pred_region
          %s549 = ssub.s32 512, 512
          %550 = vsyncadd %s499, %s549
          %s551 = smul.addr %s33, 4
          %s552 = smul.addr %s551, 128
          %s553 = scalar_lea.hbm %s6, %s552
          %s555 = sshll.u32 %s502, 4
          %s556 = int_to_ptr.vmem [resolvable:$true] %s555
          %558 = dma.vmem_to_hbm [thread:$0]  %s556, 512, %s553, %s499
        $region56: #{tpu_custom_call.1} parent=31 // pred_fallthru
          _
      $region32: #{tpu_custom_call.1} parent=5 // pred_fallthru
        _
      %p559 = scmp.le.s32.totalorder 2, %s28
      // Predicated region
      $region57: #{tpu_custom_call.1} parent=5 // pred_check
        %p560 = pneg %p559
      $region58: #{tpu_custom_call.1} parent=5 // pred_check_branch
        %562 = sbr.rel (%p560) target = $region60
      $region59: #{tpu_custom_call.1} parent=5 // pred_region
        %s563 = ssub.s32 %s28, 2
        // Predicated region
        $region61: #{tpu_custom_call.1} parent=59 // pred_check
          %p564 = pneg %p135
        $region62: #{tpu_custom_call.1} parent=59 // pred_check_branch
          %566 = sbr.rel (%p564) target = $region64
        $region63: #{tpu_custom_call.1} parent=59 // pred_region
          %s567 = sand.u32 %s120, 1
          %s568 = scalar_lea.sflag [#allocation4], %s567
          %s569 = sand.u32 %s120, 1
          %s570 = smul.addr %s569, 32
          %s571 = scalar_lea.vmem [#allocation7], %s570
          %572 = dma.done %s568, 512
        $region64: #{tpu_custom_call.1} parent=59 // pred_fallthru
          _
        // Predicated region
        $region65: #{tpu_custom_call.1} parent=59 // pred_check
          %p573 = pneg %p161
        $region66: #{tpu_custom_call.1} parent=59 // pred_check_branch
          %575 = sbr.rel (%p573) target = $region68
        $region67: #{tpu_custom_call.1} parent=59 // pred_region
          %s576 = sand.u32 %s34, 1
          %s577 = scalar_lea.sflag [#allocation9], %s576
          %s578 = sand.u32 %s146, 1
          %s579 = smul.addr %s578, 32
          %s580 = scalar_lea.vmem [#allocation8], %s579
          %581 = dma.done %s577, 512
        $region68: #{tpu_custom_call.1} parent=59 // pred_fallthru
          _
        // Predicated region
        $region69: #{tpu_custom_call.1} parent=59 // pred_check
          %p582 = pneg %p187
        $region70: #{tpu_custom_call.1} parent=59 // pred_check_branch
          %584 = sbr.rel (%p582) target = $region72
        $region71: #{tpu_custom_call.1} parent=59 // pred_region
          %s585 = sand.u32 %s34, 1
          %s586 = scalar_lea.sflag [#allocation9], %s585
          %s587 = sand.u32 %s172, 1
          %s588 = smul.addr %s587, 32
          %s589 = scalar_lea.vmem [#allocation10], %s588
          %590 = dma.done %s586, 512
        $region72: #{tpu_custom_call.1} parent=59 // pred_fallthru
          _
        // Predicated region
        $region73: #{tpu_custom_call.1} parent=59 // pred_check
          %p591 = pneg %p213
        $region74: #{tpu_custom_call.1} parent=59 // pred_check_branch
          %593 = sbr.rel (%p591) target = $region76
        $region75: #{tpu_custom_call.1} parent=59 // pred_region
          %s594 = sand.u32 %s198, 1
          %s595 = scalar_lea.sflag [#allocation12], %s594
          %s596 = sand.u32 %s198, 1
          %s597 = smul.addr %s596, 32
          %s598 = scalar_lea.vmem [#allocation11], %s597
          %599 = dma.done %s595, 512
        $region76: #{tpu_custom_call.1} parent=59 // pred_fallthru
          _
      $region60: #{tpu_custom_call.1} parent=5 // pred_fallthru
        _
    $region6: #{tpu_custom_call.1} parent=1 // loop_footer
      %s32 = sadd.s32 1, %s28
    $region7: #{tpu_custom_call.1} parent=1 // loop_footer_branch
      %27 = sbr.rel target = $region3
    $region8: #{tpu_custom_call.1} parent=1 // loop_exit
      _
    %600 = vsyncpa [#allocation3], 1
    %s601 = scalar_lea.sflag [#allocation3], 1
    %602 = vsyncpa %s601, 1
    %603 = vsyncpa [#allocation6], 1
    %s604 = scalar_lea.sflag [#allocation6], 1
    %605 = vsyncpa %s604, 1
    %606 = vsyncpa [#allocation4], 1
    %s607 = scalar_lea.sflag [#allocation4], 1
    %608 = vsyncpa %s607, 1
    %609 = vsyncpa [#allocation9], 1
    %s610 = scalar_lea.sflag [#allocation9], 1
    %611 = vsyncpa %s610, 1
    %612 = vsyncpa [#allocation12], 1
    %s613 = scalar_lea.sflag [#allocation12], 1
    %614 = vsyncpa %s613, 1

</llo_original>
